<compile_context>
chip_gen: v7x
topology: tpu7x:2x2x1
jax: 0.10.0
libtpu: 0.0.40
codegen_flags: <defaults>
</compile_context>

<pallas_src>
import math

import jax
import jax.numpy as jnp
from jax.experimental import pallas as pl
from jax.experimental.pallas import tpu as pltpu


def _round_up(x, m):
    return ((x + m - 1) // m) * m


# ---------------------------------------------------------------------------
# Kernel 1: loop-invariant (D, D) rule-matrix chain, computed exactly once.
# ---------------------------------------------------------------------------
def rule_matrix_kernel(rmat_ref, rtrans_ref, wt_ref, b_ref, m2_ref):
    m0 = jnp.dot(rmat_ref[...], rtrans_ref[...], preferred_element_type=jnp.float32)
    m1 = jnp.dot(m0, wt_ref[...], preferred_element_type=jnp.float32) + b_ref[...]
    m2 = jnp.tanh(jnp.dot(m1, wt_ref[...], preferred_element_type=jnp.float32) + b_ref[...])
    m2_ref[...] = m2.astype(m2_ref.dtype)


# ---------------------------------------------------------------------------
# Kernel 2: lane-dense streaming matmul  (tm, Dw) @ (Dw, Dw) -> (tm, Dw)
# ---------------------------------------------------------------------------
def streaming_matmul_kernel(h_ref, m2_ref, o_ref):
    o_ref[...] = jnp.dot(
        h_ref[...], m2_ref[...], preferred_element_type=jnp.float32
    ).astype(o_ref.dtype)


def rule_transform_forward(hidden_states, rule_mat, rule_transform, w, b, *, tm=512):
    """hidden_states: (B, S, D) float32. Returns (B, S, D) float32."""
    B, S, D = hidden_states.shape
    R = rule_transform.shape[0]
    dtype = hidden_states.dtype

    # ---- 1) Hoisted rule-matrix chain (one tiny Pallas call, grid=(1,)) ------
    wt = jnp.transpose(w)            # pass W pre-transposed; no in-kernel .T
    b2d = b.reshape(1, D)
    m2 = pl.pallas_call(
        rule_matrix_kernel,
        out_shape=jax.ShapeDtypeStruct((D, D), jnp.float32),
        grid=(1,),
        in_specs=[
            pl.BlockSpec((D, R), lambda i: (0, 0)),   # rule_mat
            pl.BlockSpec((R, D), lambda i: (0, 0)),   # rule_transform
            pl.BlockSpec((D, D), lambda i: (0, 0)),   # W^T
            pl.BlockSpec((1, D), lambda i: (0, 0)),   # bias
        ],
        out_specs=pl.BlockSpec((D, D), lambda i: (0, 0)),
    )(rule_mat, rule_transform, wt, b2d)

    # ---- 2) Lane-dense streaming contraction --------------------------------
    M = B * S
    h2d = hidden_states.reshape(M, D)

    k = 128 // math.gcd(D, 128)       # rows packed per wide row
    Dp = k * D                        # lane width if we pack (multiple of 128)

    if Dp <= 4096:
        # Pack k consecutive rows so the lane width is a multiple of 128 and
        # multiply by the block-diagonal kron(I_k, M2).  Pure view/reshape on
        # the activation: no extra HBM bytes, no masked stores.
        Dw = Dp
        m_wide = jnp.kron(jnp.eye(k, dtype=m2.dtype), m2)           # (Dw, Dw)
        M_k = _round_up(M, k)
        if M_k != M:
            h2d = jnp.pad(h2d, ((0, M_k - M), (0, 0)))
        Mw = M_k // k
        h_wide = h2d.reshape(Mw, Dw)

        def unpack(out_wide, M_pad):
            return out_wide.reshape(M_pad * k, D)[:M]
    else:
        # Fallback for large, non-128-aligned D: zero-pad the lane dimension.
        Dw = _round_up(D, 128)
        m_wide = jnp.zeros((Dw, Dw), dtype=m2.dtype).at[:D, :D].set(m2)
        h_wide = jnp.pad(h2d, ((0, 0), (0, Dw - D)))
        Mw = M

        def unpack(out_wide, M_pad):
            return out_wide[:M, :D]

    # Row-tile size: big enough to amortize per-step overhead (~0.35 us/step),
    # small enough that 2 (double-buffer) x 2 (in + out) x tm x Dw x 4B stays
    # inside the scoped-VMEM default on every generation (v5e 16 MiB, v6e/v7x 32 MiB).
    vmem_budget = 8 * 1024 * 1024
    max_tm_vmem = max(8, vmem_budget // (4 * Dw * 4))
    tm_eff = min(tm, max_tm_vmem, _round_up(Mw, 8))
    tm_eff = max(8, (tm_eff // 8) * 8)

    M_pad = _round_up(Mw, tm_eff)
    if M_pad != Mw:
        h_wide = jnp.pad(h_wide, ((0, M_pad - Mw), (0, 0)))

    out_wide = pl.pallas_call(
        streaming_matmul_kernel,
        out_shape=jax.ShapeDtypeStruct((M_pad, Dw), dtype),
        grid_spec=pltpu.PrefetchScalarGridSpec(
            num_scalar_prefetch=0,
            grid=(M_pad // tm_eff,),
            in_specs=[
                pl.BlockSpec((tm_eff, Dw), lambda i: (i, 0)),   # activation rows
                pl.BlockSpec((Dw, Dw), lambda i: (0, 0)),       # (block-diag) M2, resident
            ],
            out_specs=pl.BlockSpec((tm_eff, Dw), lambda i: (i, 0)),
        ),
        compiler_params=pltpu.CompilerParams(
            dimension_semantics=("parallel",),   # lets v7x shard rows across 2 TCs
        ),
    )(h_wide, m_wide)

    out = unpack(out_wide, M_pad)
    return out.reshape(B, S, D)


def reference_forward(hidden_states, rule_mat, rule_transform, w, b):
    m0 = rule_mat @ rule_transform
    m1 = m0 @ w.T + b
    m2 = jnp.tanh(m1 @ w.T + b)
    return jnp.einsum("bsd,de->bse", hidden_states, m2)


if __name__ == "__main__":
    # Small shapes consistent with the module's forward.
    B, S, D, R = 2, 8, 32, 16  # batch, seq, embedding_dim, max_rules
    # vocab_size / rule_scores / token_rules buffers are not used by forward.
    # TODO(synk): replace_rule / score-update paths are host-side bookkeeping, not kernels.

    key = jax.random.PRNGKey(0)
    k_h, k_rt, k_rm, k_w, k_b = jax.random.split(key, 5)

    hidden_states = jax.random.normal(k_h, (B, S, D), dtype=jnp.float32)
    rule_transform = jax.random.normal(k_rt, (R, D), dtype=jnp.float32)   # torch.randn
    rule_mat = jax.random.normal(k_rm, (D, R), dtype=jnp.float32)         # torch.randn
    # nn.Linear(D, D) init: uniform(-1/sqrt(D), 1/sqrt(D))
    bound = 1.0 / (D ** 0.5)
    w = jax.random.uniform(k_w, (D, D), minval=-bound, maxval=bound, dtype=jnp.float32)
    b = jax.random.uniform(k_b, (D,), minval=-bound, maxval=bound, dtype=jnp.float32)

    out = rule_transform_forward(hidden_states, rule_mat, rule_transform, w, b)
    out = jax.block_until_ready(out)

    ref = reference_forward(hidden_states, rule_mat, rule_transform, w, b)
    assert out.shape == (B, S, D)
    assert jnp.allclose(out, ref, atol=1e-4, rtol=1e-4)

    print("KERNEL_OK")
</pallas_src>

<mosaic_0001>
module attributes {stable_mosaic.version = 11 : i64} {
  func.func @rule_matrix_kernel(%arg0: i32, %arg1: memref<32x16xf32, #tpu.memory_space<vmem>>, %arg2: memref<16x32xf32, #tpu.memory_space<vmem>>, %arg3: memref<32x32xf32, #tpu.memory_space<vmem>>, %arg4: memref<1x32xf32, #tpu.memory_space<vmem>>, %arg5: memref<32x32xf32, #tpu.memory_space<vmem>>) attributes {dimension_semantics = [#tpu.dimension_semantics<arbitrary>], iteration_bounds = array<i64: 1>, scalar_prefetch = 0 : i64, scratch_operands = 0 : i64, tpu.core_type = #tpu.core_type<tc>, window_params = [{pipeline_mode = #tpu.pipeline_mode<synchronous>, transform_indices = @transform_0, window_bounds = array<i64: 32, 16>}, {pipeline_mode = #tpu.pipeline_mode<synchronous>, transform_indices = @transform_1, window_bounds = array<i64: 16, 32>}, {pipeline_mode = #tpu.pipeline_mode<synchronous>, transform_indices = @transform_2, window_bounds = array<i64: 32, 32>}, {pipeline_mode = #tpu.pipeline_mode<synchronous>, transform_indices = @transform_3, window_bounds = array<i64: 1, 32>}, {pipeline_mode = #tpu.pipeline_mode<synchronous>, transform_indices = @transform_4, window_bounds = array<i64: 32, 32>}]} {
    %c0 = arith.constant 0 : index
    %c0_0 = arith.constant 0 : index
    %0 = vector.load %arg1[%c0, %c0_0] : memref<32x16xf32, #tpu.memory_space<vmem>>, vector<32x16xf32>
    %c0_1 = arith.constant 0 : index
    %c0_2 = arith.constant 0 : index
    %1 = vector.load %arg2[%c0_1, %c0_2] : memref<16x32xf32, #tpu.memory_space<vmem>>, vector<16x32xf32>
    %cst = arith.constant dense<0.000000e+00> : vector<32x32xf32>
    %2 = tpu.matmul %0, %1, %cst {dimension_numbers = #tpu.dot_dimension_numbers<[1], [0], [0], [1], [0, 0, 1, 1], [], []>} : vector<32x16xf32>, vector<16x32xf32>, vector<32x32xf32> -> vector<32x32xf32>
    %c0_3 = arith.constant 0 : index
    %c0_4 = arith.constant 0 : index
    %3 = vector.load %arg3[%c0_3, %c0_4] : memref<32x32xf32, #tpu.memory_space<vmem>>, vector<32x32xf32>
    %cst_5 = arith.constant dense<0.000000e+00> : vector<32x32xf32>
    %4 = tpu.matmul %2, %3, %cst_5 {dimension_numbers = #tpu.dot_dimension_numbers<[1], [0], [0], [1], [0, 0, 1, 1], [], []>} : vector<32x32xf32>, vector<32x32xf32>, vector<32x32xf32> -> vector<32x32xf32>
    %c0_6 = arith.constant 0 : index
    %c0_7 = arith.constant 0 : index
    %5 = vector.load %arg4[%c0_6, %c0_7] : memref<1x32xf32, #tpu.memory_space<vmem>>, vector<1x32xf32>
    %6 = vector.broadcast %5 : vector<1x32xf32> to vector<32x32xf32>
    %7 = arith.addf %4, %6 : vector<32x32xf32>
    %c0_8 = arith.constant 0 : index
    %c0_9 = arith.constant 0 : index
    %8 = vector.load %arg3[%c0_8, %c0_9] : memref<32x32xf32, #tpu.memory_space<vmem>>, vector<32x32xf32>
    %cst_10 = arith.constant dense<0.000000e+00> : vector<32x32xf32>
    %9 = tpu.matmul %7, %8, %cst_10 {dimension_numbers = #tpu.dot_dimension_numbers<[1], [0], [0], [1], [0, 0, 1, 1], [], []>} : vector<32x32xf32>, vector<32x32xf32>, vector<32x32xf32> -> vector<32x32xf32>
    %c0_11 = arith.constant 0 : index
    %c0_12 = arith.constant 0 : index
    %10 = vector.load %arg4[%c0_11, %c0_12] : memref<1x32xf32, #tpu.memory_space<vmem>>, vector<1x32xf32>
    %11 = vector.broadcast %10 : vector<1x32xf32> to vector<32x32xf32>
    %12 = arith.addf %9, %11 : vector<32x32xf32>
    %13 = math.tanh %12 : vector<32x32xf32>
    %c0_13 = arith.constant 0 : index
    %c0_14 = arith.constant 0 : index
    %14 = vector.load %arg5[%c0_13, %c0_14] : memref<32x32xf32, #tpu.memory_space<vmem>>, vector<32x32xf32>
    tpu.vector_store %arg5[%c0_13, %c0_14], %13 {strides = array<i32>} : memref<32x32xf32, #tpu.memory_space<vmem>>, vector<32x32xf32>,
    return
  }
  func.func @transform_0(%arg0: i32) -> (i32, i32) {
    %c0_i32 = arith.constant 0 : i32
    %c0_i32_0 = arith.constant 0 : i32
    %c0_i32_1 = arith.constant 0 : i32
    return %c0_i32, %c0_i32_0 : i32, i32
  }
  func.func @transform_1(%arg0: i32) -> (i32, i32) {
    %c0_i32 = arith.constant 0 : i32
    %c0_i32_0 = arith.constant 0 : i32
    %c0_i32_1 = arith.constant 0 : i32
    return %c0_i32, %c0_i32_0 : i32, i32
  }
  func.func @transform_2(%arg0: i32) -> (i32, i32) {
    %c0_i32 = arith.constant 0 : i32
    %c0_i32_0 = arith.constant 0 : i32
    %c0_i32_1 = arith.constant 0 : i32
    return %c0_i32, %c0_i32_0 : i32, i32
  }
  func.func @transform_3(%arg0: i32) -> (i32, i32) {
    %c0_i32 = arith.constant 0 : i32
    %c0_i32_0 = arith.constant 0 : i32
    %c0_i32_1 = arith.constant 0 : i32
    return %c0_i32, %c0_i32_0 : i32, i32
  }
  func.func @transform_4(%arg0: i32) -> (i32, i32) {
    %c0_i32 = arith.constant 0 : i32
    %c0_i32_0 = arith.constant 0 : i32
    %c0_i32_1 = arith.constant 0 : i32
    return %c0_i32, %c0_i32_0 : i32, i32
  }
}

</mosaic_0001>

<llo_original>
// kernel: tpu_custom_call.1
$region0: #{tpu_custom_call.1}
  #allocation0 [shape = 'u32[]', space=smem, size = 0x4, offset = 0x4, fixed_abs, tag = 'smem constant byte address 0x4 - core index']
  #allocation1 [shape = 'u32[144,128]{1,0:T(1,128)}', space=vmem, size = 0x12000, scoped, tag = 'internal scratch']
  %s0 = inlined_call_operand.vmem [shape: f32[32,16], index: 0, kind: input, shape index: {}]
  %s1 = inlined_call_operand.vmem [shape: f32[16,32], index: 1, kind: input, shape index: {}]
  %s2 = inlined_call_operand.vmem [shape: f32[32,32], index: 2, kind: input, shape index: {}]
  %s3 = inlined_call_operand.vmem [shape: f32[1,32], index: 3, kind: input, shape index: {}]
  %s4 = inlined_call_operand.hbm [shape: f32[32,32], index: 4, kind: output, shape index: {}]
  %s5 = sld [smem:[#allocation0]]
  $region26: #{tpu_custom_call.1} parent=0
    _
  %s7 = ssub.s32 1, %s5
  %s8 = scalar_select 0, %s7, %s5
  $region1: #{tpu_custom_call.1} parent=0
    #allocation2 [shape = 'u8[16384]{0}', space=vmem, size = 0x4000, scoped, tag = 'output window, operand 0, single buffered']
    #allocation3 [shape = 's32[1]{0}', space=sflag, size = 0x4, scoped, tag = 'scoped memory for tpu_custom_call.1']
    %9 = vsyncpa [#allocation3], 0
    // Predicated region
    $region2: #{tpu_custom_call.1} parent=1 // pred_check
      _
    $region3: #{tpu_custom_call.1} parent=1 // pred_check_branch
      %11 = sbr.rel (0) target = $region5
    $region4: #{tpu_custom_call.1} parent=1 // pred_region
      _
    $region5: #{tpu_custom_call.1} parent=1 // pred_fallthru
      _
    // Predicated region
    $region6: #{tpu_custom_call.1} parent=1 // pred_check
      _
    $region7: #{tpu_custom_call.1} parent=1 // pred_check_branch
      %13 = sbr.rel (0) target = $region9
    $region8: #{tpu_custom_call.1} parent=1 // pred_region
      _
    $region9: #{tpu_custom_call.1} parent=1 // pred_fallthru
      _
    // Predicated region
    $region10: #{tpu_custom_call.1} parent=1 // pred_check
      _
    $region11: #{tpu_custom_call.1} parent=1 // pred_check_branch
      %15 = sbr.rel (0) target = $region13
    $region12: #{tpu_custom_call.1} parent=1 // pred_region
      _
    $region13: #{tpu_custom_call.1} parent=1 // pred_fallthru
      _
    // Predicated region
    $region14: #{tpu_custom_call.1} parent=1 // pred_check
      _
    $region15: #{tpu_custom_call.1} parent=1 // pred_check_branch
      %17 = sbr.rel (0) target = $region17
    $region16: #{tpu_custom_call.1} parent=1 // pred_region
      _
    $region17: #{tpu_custom_call.1} parent=1 // pred_fallthru
      _
    %v18 = vld [vmem:[%s0] sm:$0xff]
    %v19 = vld [vmem:[%s0 + $0x8] sm:$0xff]
    %v20 = vld [vmem:[%s0 + $0x10] sm:$0xff]
    %v21 = vld [vmem:[%s0 + $0x18] sm:$0xff]
    %v22 = vld [vmem:[%s1] sm:$0xff]
    %v23 = vld [vmem:[%s1 + $0x8] sm:$0xff]
    %vm24 = vcmask 130048
    %v26 = vsel %vm24, %v18, 0
    %v29 = vsel %vm24, %v19, 0
    %v32 = vsel %vm24, %v20, 0
    %v35 = vsel %vm24, %v21, 0
    %37 = vmatprep.subr.mxu0 0.0
    %38 = vmatpush1.msra.mxu0 %v22
    %39 = vmatprep.subr.mxu0 0.0
    %40 = vmatpush1.msra.mxu0 %v23
    %41 = vmatprep.subr.mxu0 0.0
    %42 = vmatpush1.msra.mxu0 0.0
    %43 = vmatprep.subr.mxu0 0.0
    %44 = vmatpush1.msra.mxu0 0.0
    %45 = vmatprep.subr.mxu0 0.0
    %46 = vmatpush1.msra.mxu0 0.0
    %47 = vmatprep.subr.mxu0 0.0
    %48 = vmatpush1.msra.mxu0 0.0
    %49 = vmatprep.subr.mxu0 0.0
    %50 = vmatpush1.msra.mxu0 0.0
    %51 = vmatprep.subr.mxu0 0.0
    %52 = vmatpush1.msra.mxu0 0.0
    %53 = vmatprep.subr.mxu0 0.0
    %54 = vmatpush1.msra.mxu0 0.0
    %55 = vmatprep.subr.mxu0 0.0
    %56 = vmatpush1.msra.mxu0 0.0
    %57 = vmatprep.subr.mxu0 0.0
    %58 = vmatpush1.msra.mxu0 0.0
    %59 = vmatprep.subr.mxu0 0.0
    %60 = vmatpush1.msra.mxu0 0.0
    %61 = vmatprep.subr.mxu0 0.0
    %62 = vmatpush1.msra.mxu0 0.0
    %63 = vmatprep.subr.mxu0 0.0
    %64 = vmatpush1.msra.mxu0 0.0
    %65 = vmatprep.subr.mxu0 0.0
    %66 = vmatpush1.msra.mxu0 0.0
    %67 = vmatprep.subr.mxu0 0.0
    %68 = vmatpush1.msra.mxu0 0.0
    %69 = vmatprep.subr.mxu0 0.0
    %70 = vmatpush1.msra.mxu0 0.0
    %71 = vmatprep.subr.mxu0 0.0
    %72 = vmatpush1.msra.mxu0 0.0
    %73 = vmatprep.subr.mxu0 0.0
    %74 = vmatpush1.msra.mxu0 0.0
    %75 = vmatprep.subr.mxu0 0.0
    %76 = vmatpush1.msra.mxu0 0.0
    %77 = vmatprep.subr.mxu0 0.0
    %78 = vmatpush1.msra.mxu0 0.0
    %79 = vmatprep.subr.mxu0 0.0
    %80 = vmatpush1.msra.mxu0 0.0
    %81 = vmatprep.subr.mxu0 0.0
    %82 = vmatpush1.msra.mxu0 0.0
    %83 = vmatprep.subr.mxu0 0.0
    %84 = vmatpush1.msra.mxu0 0.0
    %85 = vmatprep.subr.mxu0 0.0
    %86 = vmatpush1.msra.mxu0 0.0
    %87 = vmatprep.subr.mxu0 0.0
    %88 = vmatpush1.msra.mxu0 0.0
    %89 = vmatprep.subr.mxu0 0.0
    %90 = vmatpush1.msra.mxu0 0.0
    %91 = vmatprep.subr.mxu0 0.0
    %92 = vmatpush1.msra.mxu0 0.0
    %93 = vmatprep.subr.mxu0 0.0
    %94 = vmatpush1.msra.mxu0 0.0
    %95 = vmatprep.subr.mxu0 0.0
    %96 = vmatpush1.msra.mxu0 0.0
    %97 = vmatprep.subr.mxu0 0.0
    %98 = vmatpush1.msra.mxu0 0.0
    %99 = vmatprep.subr.mxu0 0.0
    %100 = vmatpush1.msra.mxu0 0.0
    %101 = vmatprep.mubr.f32.mxu0 0.0
    %102 = vmatmul.mubr.f32.gmra.mrb[0].mxu0 %v26
    %v103 = vpop.f32.mrb[0].mxu0
    %v104 = vadd.f32 0.0, %v103
    %v105 = vpop.f32.mrb[0].mxu0
    %106 = vmatprep.mubr.f32.mxu0 0.0
    %107 = vmatmul.mubr.f32.gmra.mrb[0].mxu0 %v29
    %v108 = vpop.f32.mrb[0].mxu0
    %v109 = vadd.f32 0.0, %v108
    %v110 = vpop.f32.mrb[0].mxu0
    %111 = vmatprep.mubr.f32.mxu0 0.0
    %112 = vmatmul.mubr.f32.gmra.mrb[0].mxu0 %v32
    %v113 = vpop.f32.mrb[0].mxu0
    %v114 = vadd.f32 0.0, %v113
    %v115 = vpop.f32.mrb[0].mxu0
    %116 = vmatprep.mubr.f32.mxu0 0.0
    %117 = vmatmul.mubr.f32.gmra.mrb[0].mxu0 %v35
    %v118 = vpop.f32.mrb[0].mxu0
    %v119 = vadd.f32 0.0, %v118
    %v120 = vpop.f32.mrb[0].mxu0
    %121 = vdwg.mxu0
    %v122 = vld [vmem:[%s2] sm:$0xff]
    %v123 = vld [vmem:[%s2 + $0x8] sm:$0xff]
    %v124 = vld [vmem:[%s2 + $0x10] sm:$0xff]
    %v125 = vld [vmem:[%s2 + $0x18] sm:$0xff]
    %v126 = vld [vmem:[%s3] sm:$0x1]
    %v128 = vlaneseq
    %v129 = vshrl.u32 %v128, 7
    %v130 = vsub.s32 0, %v129
    %v131 = vrot.slane %v126, %v130
    %vm133 = vcmask 261120
    %v135 = vsel %vm133, %v104, 0
    %v138 = vsel %vm133, %v109, 0
    %v141 = vsel %vm133, %v114, 0
    %v144 = vsel %vm133, %v119, 0
    %146 = vmatprep.subr.mxu0 0.0
    %147 = vmatpush1.msra.mxu0 %v122
    %148 = vmatprep.subr.mxu0 0.0
    %149 = vmatpush1.msra.mxu0 %v123
    %150 = vmatprep.subr.mxu0 0.0
    %151 = vmatpush1.msra.mxu0 %v124
    %152 = vmatprep.subr.mxu0 0.0
    %153 = vmatpush1.msra.mxu0 %v125
    %154 = vmatprep.subr.mxu0 0.0
    %155 = vmatpush1.msra.mxu0 0.0
    %156 = vmatprep.subr.mxu0 0.0
    %157 = vmatpush1.msra.mxu0 0.0
    %158 = vmatprep.subr.mxu0 0.0
    %159 = vmatpush1.msra.mxu0 0.0
    %160 = vmatprep.subr.mxu0 0.0
    %161 = vmatpush1.msra.mxu0 0.0
    %162 = vmatprep.subr.mxu0 0.0
    %163 = vmatpush1.msra.mxu0 0.0
    %164 = vmatprep.subr.mxu0 0.0
    %165 = vmatpush1.msra.mxu0 0.0
    %166 = vmatprep.subr.mxu0 0.0
    %167 = vmatpush1.msra.mxu0 0.0
    %168 = vmatprep.subr.mxu0 0.0
    %169 = vmatpush1.msra.mxu0 0.0
    %170 = vmatprep.subr.mxu0 0.0
    %171 = vmatpush1.msra.mxu0 0.0
    %172 = vmatprep.subr.mxu0 0.0
    %173 = vmatpush1.msra.mxu0 0.0
    %174 = vmatprep.subr.mxu0 0.0
    %175 = vmatpush1.msra.mxu0 0.0
    %176 = vmatprep.subr.mxu0 0.0
    %177 = vmatpush1.msra.mxu0 0.0
    %178 = vmatprep.subr.mxu0 0.0
    %179 = vmatpush1.msra.mxu0 0.0
    %180 = vmatprep.subr.mxu0 0.0
    %181 = vmatpush1.msra.mxu0 0.0
    %182 = vmatprep.subr.mxu0 0.0
    %183 = vmatpush1.msra.mxu0 0.0
    %184 = vmatprep.subr.mxu0 0.0
    %185 = vmatpush1.msra.mxu0 0.0
    %186 = vmatprep.subr.mxu0 0.0
    %187 = vmatpush1.msra.mxu0 0.0
    %188 = vmatprep.subr.mxu0 0.0
    %189 = vmatpush1.msra.mxu0 0.0
    %190 = vmatprep.subr.mxu0 0.0
    %191 = vmatpush1.msra.mxu0 0.0
    %192 = vmatprep.subr.mxu0 0.0
    %193 = vmatpush1.msra.mxu0 0.0
    %194 = vmatprep.subr.mxu0 0.0
    %195 = vmatpush1.msra.mxu0 0.0
    %196 = vmatprep.subr.mxu0 0.0
    %197 = vmatpush1.msra.mxu0 0.0
    %198 = vmatprep.subr.mxu0 0.0
    %199 = vmatpush1.msra.mxu0 0.0
    %200 = vmatprep.subr.mxu0 0.0
    %201 = vmatpush1.msra.mxu0 0.0
    %202 = vmatprep.subr.mxu0 0.0
    %203 = vmatpush1.msra.mxu0 0.0
    %204 = vmatprep.subr.mxu0 0.0
    %205 = vmatpush1.msra.mxu0 0.0
    %206 = vmatprep.subr.mxu0 0.0
    %207 = vmatpush1.msra.mxu0 0.0
    %208 = vmatprep.subr.mxu0 0.0
    %209 = vmatpush1.msra.mxu0 0.0
    %210 = vmatprep.mubr.f32.mxu0 0.0
    %211 = vmatmul.mubr.f32.gmra.mrb[0].mxu0 %v135
    %v212 = vpop.f32.mrb[0].mxu0
    %v213 = vadd.f32 %v131, %v212
    %v214 = vpop.f32.mrb[0].mxu0
    %215 = vmatprep.mubr.f32.mxu0 0.0
    %216 = vmatmul.mubr.f32.gmra.mrb[0].mxu0 %v138
    %v217 = vpop.f32.mrb[0].mxu0
    %v218 = vadd.f32 %v131, %v217
    %v219 = vpop.f32.mrb[0].mxu0
    %220 = vmatprep.mubr.f32.mxu0 0.0
    %221 = vmatmul.mubr.f32.gmra.mrb[0].mxu0 %v141
    %v222 = vpop.f32.mrb[0].mxu0
    %v223 = vadd.f32 %v131, %v222
    %v224 = vpop.f32.mrb[0].mxu0
    %225 = vmatprep.mubr.f32.mxu0 0.0
    %226 = vmatmul.mubr.f32.gmra.mrb[0].mxu0 %v144
    %v227 = vpop.f32.mrb[0].mxu0
    %v228 = vadd.f32 %v131, %v227
    %v229 = vpop.f32.mrb[0].mxu0
    %230 = vdwg.mxu0
    %v232 = vsel %vm133, %v213, 0
    %v235 = vsel %vm133, %v218, 0
    %v238 = vsel %vm133, %v223, 0
    %v241 = vsel %vm133, %v228, 0
    %243 = vmatprep.subr.mxu0 0.0
    %244 = vmatpush1.msra.mxu0 %v122
    %245 = vmatprep.subr.mxu0 0.0
    %246 = vmatpush1.msra.mxu0 %v123
    %247 = vmatprep.subr.mxu0 0.0
    %248 = vmatpush1.msra.mxu0 %v124
    %249 = vmatprep.subr.mxu0 0.0
    %250 = vmatpush1.msra.mxu0 %v125
    %251 = vmatprep.subr.mxu0 0.0
    %252 = vmatpush1.msra.mxu0 0.0
    %253 = vmatprep.subr.mxu0 0.0
    %254 = vmatpush1.msra.mxu0 0.0
    %255 = vmatprep.subr.mxu0 0.0
    %256 = vmatpush1.msra.mxu0 0.0
    %257 = vmatprep.subr.mxu0 0.0
    %258 = vmatpush1.msra.mxu0 0.0
    %259 = vmatprep.subr.mxu0 0.0
    %260 = vmatpush1.msra.mxu0 0.0
    %261 = vmatprep.subr.mxu0 0.0
    %262 = vmatpush1.msra.mxu0 0.0
    %263 = vmatprep.subr.mxu0 0.0
    %264 = vmatpush1.msra.mxu0 0.0
    %265 = vmatprep.subr.mxu0 0.0
    %266 = vmatpush1.msra.mxu0 0.0
    %267 = vmatprep.subr.mxu0 0.0
    %268 = vmatpush1.msra.mxu0 0.0
    %269 = vmatprep.subr.mxu0 0.0
    %270 = vmatpush1.msra.mxu0 0.0
    %271 = vmatprep.subr.mxu0 0.0
    %272 = vmatpush1.msra.mxu0 0.0
    %273 = vmatprep.subr.mxu0 0.0
    %274 = vmatpush1.msra.mxu0 0.0
    %275 = vmatprep.subr.mxu0 0.0
    %276 = vmatpush1.msra.mxu0 0.0
    %277 = vmatprep.subr.mxu0 0.0
    %278 = vmatpush1.msra.mxu0 0.0
    %279 = vmatprep.subr.mxu0 0.0
    %280 = vmatpush1.msra.mxu0 0.0
    %281 = vmatprep.subr.mxu0 0.0
    %282 = vmatpush1.msra.mxu0 0.0
    %283 = vmatprep.subr.mxu0 0.0
    %284 = vmatpush1.msra.mxu0 0.0
    %285 = vmatprep.subr.mxu0 0.0
    %286 = vmatpush1.msra.mxu0 0.0
    %287 = vmatprep.subr.mxu0 0.0
    %288 = vmatpush1.msra.mxu0 0.0
    %289 = vmatprep.subr.mxu0 0.0
    %290 = vmatpush1.msra.mxu0 0.0
    %291 = vmatprep.subr.mxu0 0.0
    %292 = vmatpush1.msra.mxu0 0.0
    %293 = vmatprep.subr.mxu0 0.0
    %294 = vmatpush1.msra.mxu0 0.0
    %295 = vmatprep.subr.mxu0 0.0
    %296 = vmatpush1.msra.mxu0 0.0
    %297 = vmatprep.subr.mxu0 0.0
    %298 = vmatpush1.msra.mxu0 0.0
    %299 = vmatprep.subr.mxu0 0.0
    %300 = vmatpush1.msra.mxu0 0.0
    %301 = vmatprep.subr.mxu0 0.0
    %302 = vmatpush1.msra.mxu0 0.0
    %303 = vmatprep.subr.mxu0 0.0
    %304 = vmatpush1.msra.mxu0 0.0
    %305 = vmatprep.subr.mxu0 0.0
    %306 = vmatpush1.msra.mxu0 0.0
    %307 = vmatprep.mubr.f32.mxu0 0.0
    %308 = vmatmul.mubr.f32.gmra.mrb[0].mxu0 %v232
    %v309 = vpop.f32.mrb[0].mxu0
    %v310 = vadd.f32 %v131, %v309
    %v311 = vpop.f32.mrb[0].mxu0
    %312 = vmatprep.mubr.f32.mxu0 0.0
    %313 = vmatmul.mubr.f32.gmra.mrb[0].mxu0 %v235
    %v314 = vpop.f32.mrb[0].mxu0
    %v315 = vadd.f32 %v131, %v314
    %v316 = vpop.f32.mrb[0].mxu0
    %317 = vmatprep.mubr.f32.mxu0 0.0
    %318 = vmatmul.mubr.f32.gmra.mrb[0].mxu0 %v238
    %v319 = vpop.f32.mrb[0].mxu0
    %v320 = vadd.f32 %v131, %v319
    %v321 = vpop.f32.mrb[0].mxu0
    %322 = vmatprep.mubr.f32.mxu0 0.0
    %323 = vmatmul.mubr.f32.gmra.mrb[0].mxu0 %v241
    %v324 = vpop.f32.mrb[0].mxu0
    %v325 = vadd.f32 %v131, %v324
    %v326 = vpop.f32.mrb[0].mxu0
    %327 = vdwg.mxu0
    %v328 = vtanh.pop %v310
    %v329 = vtanh.pop %v315
    %v330 = vtanh.pop %v320
    %v331 = vtanh.pop %v325
    %332 = vst.msk [vmem:[#allocation2] sm:$0xff] %vm133, %v328
    %333 = vst.msk [vmem:[#allocation2 + $0x8] sm:$0xff] %vm133, %v329
    %334 = vst.msk [vmem:[#allocation2 + $0x10] sm:$0xff] %vm133, %v330
    %335 = vst.msk [vmem:[#allocation2 + $0x18] sm:$0xff] %vm133, %v331
    // Predicated region
    $region18: #{tpu_custom_call.1} parent=1 // pred_check
      _
    $region19: #{tpu_custom_call.1} parent=1 // pred_check_branch
      %337 = sbr.rel (0) target = $region21
    $region20: #{tpu_custom_call.1} parent=1 // pred_region
      %s339 = ssub.s32 512, 512
      %340 = vsyncadd [#allocation3], %s339
      %s341 = sshll.u32 [#allocation2], 4
      %s342 = int_to_ptr.vmem [resolvable:$true] %s341
      %347 = dma.vmem_to_hbm [thread:$0]  %s342, 512, %s4, [#allocation3], 128, 128, 8
    $region21: #{tpu_custom_call.1} parent=1 // pred_fallthru
      _
    // Predicated region
    $region22: #{tpu_custom_call.1} parent=1 // pred_check
      _
    $region23: #{tpu_custom_call.1} parent=1 // pred_check_branch
      %349 = sbr.rel (0) target = $region25
    $region24: #{tpu_custom_call.1} parent=1 // pred_region
      %350 = dma.done [#allocation3], 512
    $region25: #{tpu_custom_call.1} parent=1 // pred_fallthru
      _
    %351 = vsyncpa [#allocation3], 1

</llo_original>
